<compile_context>
chip_gen: v6e
topology: v6e:2x2x1
jax: 0.10.0
libtpu: 0.0.40
codegen_flags: <defaults>
</compile_context>

<pallas_src>
import jax
import jax.numpy as jnp
import numpy as np
from jax.experimental import pallas as pl
from jax.experimental.pallas import tpu as pltpu

LANE = 128          # lane width: every layer's feature dim is padded to 128
SUBLANE = 8         # f32 sublane group: batch is padded to a multiple of 8
_BATCH_TILE = 512   # batch tile used only on the large-batch (gridded) path


def _net_kernel(x_ref, w_ref, b_ref, o_ref):
    """Fused 4-layer MLP forward: 4 bf16 MXU matmuls (f32 acc) + bias + ReLU.

    x_ref : (TB, 128)      bf16 zero-padded input
    w_ref : (4, 128, 128)  bf16 packed weights; [j, :K_j, :N_j] = W_j (in,out)
    b_ref : (4, 1, 128)    f32  packed biases;  [j, 0, :N_j]    = b_j
    o_ref : (TB, 128)      f32  padded logits; columns [0, n_output) valid

    Every operand is (8,128)/(16,128)-tile aligned: no masked loads, no
    relayouts.  Bias-add + ReLU are VALU ops hidden under MXU slack.
    Padded lanes stay exactly zero through every layer (zero weight rows,
    zero bias lanes), so the wrapper's final slice is exact.
    """
    h = x_ref[...]
    for j in range(3):
        a = jnp.dot(h, w_ref[j], preferred_element_type=jnp.float32)
        h = jnp.maximum(a + b_ref[j], 0.0).astype(jnp.bfloat16)
    o_ref[...] = (
        jnp.dot(h, w_ref[3], preferred_element_type=jnp.float32) + b_ref[3]
    )


def pack_params(params, n_feature, n_hidden, n_output):
    """Pack weights into one bf16 (4,128,128) slab and biases into f32 (4,1,128)."""
    dims = [
        (n_feature, n_hidden),       # h1
        (n_hidden, n_hidden * 2),    # h2
        (n_hidden * 2, n_hidden),    # h3
        (n_hidden, n_output),        # predict
    ]
    w_blocks, b_blocks = [], []
    for j, (k, n) in enumerate(dims):
        assert k <= LANE and n <= LANE, "layer dims must fit in one 128-lane block"
        w = np.zeros((LANE, LANE), np.float32)
        w[:k, :n] = np.asarray(params[f"w{j + 1}"], np.float32)
        b = np.zeros((1, LANE), np.float32)
        b[0, :n] = np.asarray(params[f"b{j + 1}"], np.float32).reshape(n)
        w_blocks.append(w)
        b_blocks.append(b)
    w_packed = jnp.asarray(np.stack(w_blocks), jnp.bfloat16)   # (4, 128, 128)
    b_packed = jnp.asarray(np.stack(b_blocks), jnp.float32)    # (4, 1, 128)
    return w_packed, b_packed


def net_forward(x, w_packed, b_packed, n_output):
    """Run the fused MLP Pallas kernel.

    x:        (B, n_feature) float32
    w_packed: (4, 128, 128) bfloat16 slab from pack_params()
    b_packed: (4, 1, 128)   float32  slab from pack_params()
    returns:  (B, n_output) float32 logits
    """
    B, F = x.shape
    assert F <= LANE and n_output <= LANE

    if B <= _BATCH_TILE:
        b_pad = max(SUBLANE, -(-B // SUBLANE) * SUBLANE)
    else:
        b_pad = -(-B // _BATCH_TILE) * _BATCH_TILE

    # Single fused wrapper op: zero-pad to a lane-dense bf16 slab.
    x_p = jnp.pad(x.astype(jnp.bfloat16), ((0, b_pad - B), (0, LANE - F)))

    out_shape = jax.ShapeDtypeStruct((b_pad, LANE), jnp.float32)
    vmem = pl.BlockSpec(memory_space=pltpu.MemorySpace.VMEM)

    if b_pad <= _BATCH_TILE:
        # Small batch: one fused block, no grid (a grid would be pure per-step
        # overhead).  This path is launch/DMA bound by construction.
        out = pl.pallas_call(
            _net_kernel,
            out_shape=out_shape,
            in_specs=[vmem, vmem, vmem],
            out_specs=vmem,
        )(x_p, w_packed, b_packed)
    else:
        # Large batch: tile the batch axis (512 rows/step) and mark it
        # parallel so v7x's two TensorCores each take half the (even-length)
        # grid.  The weight/bias slabs have constant index_maps, so they are
        # loop-invariant and DMA'd into VMEM once.
        out = pl.pallas_call(
            _net_kernel,
            out_shape=out_shape,
            grid=(b_pad // _BATCH_TILE,),
            in_specs=[
                pl.BlockSpec((_BATCH_TILE, LANE), lambda i: (i, 0)),
                pl.BlockSpec((4, LANE, LANE), lambda i: (0, 0, 0)),
                pl.BlockSpec((4, 1, LANE), lambda i: (0, 0, 0)),
            ],
            out_specs=pl.BlockSpec((_BATCH_TILE, LANE), lambda i: (i, 0)),
            compiler_params=pltpu.CompilerParams(
                dimension_semantics=("parallel",)),
        )(x_p, w_packed, b_packed)

    return out[:B, :n_output]


def init_params(key, n_feature, n_hidden, n_output):
    """Deterministic init matching nn.Linear's default (U[+/- 1/sqrt(fan_in)]).

    Weights are stored as (in, out) — already transposed relative to PyTorch's
    (out, in) layout — so the forward computes x @ W + b.
    """
    dims = [
        (n_feature, n_hidden),
        (n_hidden, n_hidden * 2),
        (n_hidden * 2, n_hidden),
        (n_hidden, n_output),
    ]
    params = {}
    keys = jax.random.split(key, 2 * len(dims))
    for i, (fan_in, fan_out) in enumerate(dims):
        bound = 1.0 / np.sqrt(fan_in)
        params[f"w{i + 1}"] = jax.random.uniform(
            keys[2 * i], (fan_in, fan_out), jnp.float32, -bound, bound)
        params[f"b{i + 1}"] = jax.random.uniform(
            keys[2 * i + 1], (1, fan_out), jnp.float32, -bound, bound)
    return params


def net_forward_ref(x, p):
    """Pure-JAX f32 reference (mirrors the PyTorch forward)."""
    h = jax.nn.relu(x @ p["w1"] + p["b1"])
    h = jax.nn.relu(h @ p["w2"] + p["b2"])
    h = jax.nn.relu(h @ p["w3"] + p["b3"])
    return h @ p["w4"] + p["b4"]


if __name__ == "__main__":
    # Tic-tac-toe board: 9 features, 9 output logits; small hidden width.
    B, n_feature, n_hidden, n_output = 8, 9, 32, 9

    key = jax.random.PRNGKey(0)
    k_params, k_x, k_xb = jax.random.split(key, 3)

    params = init_params(k_params, n_feature, n_hidden, n_output)
    w_packed, b_packed = pack_params(params, n_feature, n_hidden, n_output)

    # Tolerances are loose because the MXU operands are bf16 (accumulation
    # and biases stay f32); the reference is full f32.

    # --- small-batch (gridless) path ---
    x = jax.random.normal(k_x, (B, n_feature), dtype=jnp.float32)
    out = jax.block_until_ready(net_forward(x, w_packed, b_packed, n_output))
    ref = net_forward_ref(x, params)
    assert out.shape == (B, n_output)
    np.testing.assert_allclose(np.asarray(out), np.asarray(ref),
                               rtol=5e-2, atol=5e-2)

    # --- large-batch (parallel batch grid, 2 x 512-row tiles) path ---
    xb = jax.random.normal(k_xb, (1000, n_feature), dtype=jnp.float32)
    outb = jax.block_until_ready(net_forward(xb, w_packed, b_packed, n_output))
    refb = net_forward_ref(xb, params)
    assert outb.shape == (1000, n_output)
    np.testing.assert_allclose(np.asarray(outb), np.asarray(refb),
                               rtol=5e-2, atol=5e-2)

    print("KERNEL_OK")
</pallas_src>

<mosaic_0001>
module attributes {stable_mosaic.version = 11 : i64} {
  func.func @_net_kernel(%arg0: memref<8x128xbf16, #tpu.memory_space<vmem>>, %arg1: memref<4x128x128xbf16, #tpu.memory_space<vmem>>, %arg2: memref<4x1x128xf32, #tpu.memory_space<vmem>>, %arg3: memref<8x128xf32, #tpu.memory_space<vmem>>) attributes {dimension_semantics = [], scalar_prefetch = 0 : i64, scratch_operands = 0 : i64, tpu.core_type = #tpu.core_type<tc>} {
    %c0 = arith.constant 0 : index
    %c0_0 = arith.constant 0 : index
    %0 = vector.load %arg0[%c0, %c0_0] : memref<8x128xbf16, #tpu.memory_space<vmem>>, vector<8x128xbf16>
    %c0_1 = arith.constant 0 : index
    %c0_2 = arith.constant 0 : index
    %c0_3 = arith.constant 0 : index
    %1 = vector.load %arg1[%c0_1, %c0_2, %c0_3] : memref<4x128x128xbf16, #tpu.memory_space<vmem>>, vector<1x128x128xbf16>
    %2 = vector.shape_cast %1 : vector<1x128x128xbf16> to vector<128x128xbf16>
    %cst = arith.constant dense<0.000000e+00> : vector<8x128xf32>
    %3 = tpu.matmul %0, %2, %cst {dimension_numbers = #tpu.dot_dimension_numbers<[1], [0], [0], [1], [0, 0, 1, 1], [], []>} : vector<8x128xbf16>, vector<128x128xbf16>, vector<8x128xf32> -> vector<8x128xf32>
    %c0_4 = arith.constant 0 : index
    %c0_5 = arith.constant 0 : index
    %c0_6 = arith.constant 0 : index
    %4 = vector.load %arg2[%c0_4, %c0_5, %c0_6] : memref<4x1x128xf32, #tpu.memory_space<vmem>>, vector<1x1x128xf32>
    %5 = vector.shape_cast %4 : vector<1x1x128xf32> to vector<1x128xf32>
    %6 = vector.broadcast %5 : vector<1x128xf32> to vector<8x128xf32>
    %7 = arith.addf %3, %6 : vector<8x128xf32>
    %cst_7 = arith.constant 0.000000e+00 : f32
    %8 = vector.broadcast %cst_7 : f32 to vector<8x128xf32>
    %9 = arith.maximumf %7, %8 : vector<8x128xf32>
    %10 = arith.truncf %9 : vector<8x128xf32> to vector<8x128xbf16>
    %c1 = arith.constant 1 : index
    %c0_8 = arith.constant 0 : index
    %c0_9 = arith.constant 0 : index
    %11 = vector.load %arg1[%c1, %c0_8, %c0_9] : memref<4x128x128xbf16, #tpu.memory_space<vmem>>, vector<1x128x128xbf16>
    %12 = vector.shape_cast %11 : vector<1x128x128xbf16> to vector<128x128xbf16>
    %cst_10 = arith.constant dense<0.000000e+00> : vector<8x128xf32>
    %13 = tpu.matmul %10, %12, %cst_10 {dimension_numbers = #tpu.dot_dimension_numbers<[1], [0], [0], [1], [0, 0, 1, 1], [], []>} : vector<8x128xbf16>, vector<128x128xbf16>, vector<8x128xf32> -> vector<8x128xf32>
    %c1_11 = arith.constant 1 : index
    %c0_12 = arith.constant 0 : index
    %c0_13 = arith.constant 0 : index
    %14 = vector.load %arg2[%c1_11, %c0_12, %c0_13] : memref<4x1x128xf32, #tpu.memory_space<vmem>>, vector<1x1x128xf32>
    %15 = vector.shape_cast %14 : vector<1x1x128xf32> to vector<1x128xf32>
    %16 = vector.broadcast %15 : vector<1x128xf32> to vector<8x128xf32>
    %17 = arith.addf %13, %16 : vector<8x128xf32>
    %cst_14 = arith.constant 0.000000e+00 : f32
    %18 = vector.broadcast %cst_14 : f32 to vector<8x128xf32>
    %19 = arith.maximumf %17, %18 : vector<8x128xf32>
    %20 = arith.truncf %19 : vector<8x128xf32> to vector<8x128xbf16>
    %c2 = arith.constant 2 : index
    %c0_15 = arith.constant 0 : index
    %c0_16 = arith.constant 0 : index
    %21 = vector.load %arg1[%c2, %c0_15, %c0_16] : memref<4x128x128xbf16, #tpu.memory_space<vmem>>, vector<1x128x128xbf16>
    %22 = vector.shape_cast %21 : vector<1x128x128xbf16> to vector<128x128xbf16>
    %cst_17 = arith.constant dense<0.000000e+00> : vector<8x128xf32>
    %23 = tpu.matmul %20, %22, %cst_17 {dimension_numbers = #tpu.dot_dimension_numbers<[1], [0], [0], [1], [0, 0, 1, 1], [], []>} : vector<8x128xbf16>, vector<128x128xbf16>, vector<8x128xf32> -> vector<8x128xf32>
    %c2_18 = arith.constant 2 : index
    %c0_19 = arith.constant 0 : index
    %c0_20 = arith.constant 0 : index
    %24 = vector.load %arg2[%c2_18, %c0_19, %c0_20] : memref<4x1x128xf32, #tpu.memory_space<vmem>>, vector<1x1x128xf32>
    %25 = vector.shape_cast %24 : vector<1x1x128xf32> to vector<1x128xf32>
    %26 = vector.broadcast %25 : vector<1x128xf32> to vector<8x128xf32>
    %27 = arith.addf %23, %26 : vector<8x128xf32>
    %cst_21 = arith.constant 0.000000e+00 : f32
    %28 = vector.broadcast %cst_21 : f32 to vector<8x128xf32>
    %29 = arith.maximumf %27, %28 : vector<8x128xf32>
    %30 = arith.truncf %29 : vector<8x128xf32> to vector<8x128xbf16>
    %c3 = arith.constant 3 : index
    %c0_22 = arith.constant 0 : index
    %c0_23 = arith.constant 0 : index
    %31 = vector.load %arg1[%c3, %c0_22, %c0_23] : memref<4x128x128xbf16, #tpu.memory_space<vmem>>, vector<1x128x128xbf16>
    %32 = vector.shape_cast %31 : vector<1x128x128xbf16> to vector<128x128xbf16>
    %cst_24 = arith.constant dense<0.000000e+00> : vector<8x128xf32>
    %33 = tpu.matmul %30, %32, %cst_24 {dimension_numbers = #tpu.dot_dimension_numbers<[1], [0], [0], [1], [0, 0, 1, 1], [], []>} : vector<8x128xbf16>, vector<128x128xbf16>, vector<8x128xf32> -> vector<8x128xf32>
    %c3_25 = arith.constant 3 : index
    %c0_26 = arith.constant 0 : index
    %c0_27 = arith.constant 0 : index
    %34 = vector.load %arg2[%c3_25, %c0_26, %c0_27] : memref<4x1x128xf32, #tpu.memory_space<vmem>>, vector<1x1x128xf32>
    %35 = vector.shape_cast %34 : vector<1x1x128xf32> to vector<1x128xf32>
    %36 = vector.broadcast %35 : vector<1x128xf32> to vector<8x128xf32>
    %37 = arith.addf %33, %36 : vector<8x128xf32>
    %c0_28 = arith.constant 0 : index
    %c0_29 = arith.constant 0 : index
    %38 = vector.load %arg3[%c0_28, %c0_29] : memref<8x128xf32, #tpu.memory_space<vmem>>, vector<8x128xf32>
    tpu.vector_store %arg3[%c0_28, %c0_29], %37 {strides = array<i32>} : memref<8x128xf32, #tpu.memory_space<vmem>>, vector<8x128xf32>,
    return
  }
}

</mosaic_0001>

<llo_original>
// kernel: tpu_custom_call.1
$region0: #{tpu_custom_call.1}
  #allocation0 [shape = 'u32[]', space=smem, size = 0x4, offset = 0x4, fixed_abs, tag = 'smem constant byte address 0x4 - core index']
  #allocation1 [shape = 'u32[144,128]{1,0:T(1,128)}', space=vmem, size = 0x12000, scoped, tag = 'internal scratch']
  %s0 = inlined_call_operand.hbm [shape: bf16[8,128], index: 0, kind: input, shape index: {}]
  %s1 = inlined_call_operand.hbm [shape: bf16[4,128,128], index: 1, kind: input, shape index: {}]
  %s2 = inlined_call_operand.hbm [shape: f32[4,1,128], index: 2, kind: input, shape index: {}]
  %s3 = inlined_call_operand.hbm [shape: f32[8,128], index: 3, kind: output, shape index: {}]
  %s4 = sld [smem:[#allocation0]]
  $region34: #{tpu_custom_call.1} parent=0
    _
  %s6 = ssub.s32 1, %s4
  %s7 = scalar_select 0, %s6, %s4
  $region1: #{tpu_custom_call.1} parent=0
    #allocation2 [shape = 'u8[2048]{0}', space=vmem, size = 0x800, scoped, tag = 'input window, operand 0, single buffered']
    #allocation3 [shape = 's32[1]{0}', space=sflag, size = 0x4, scoped, tag = 'scoped memory for tpu_custom_call.1']
    #allocation4 [shape = 's32[1]{0}', space=sflag, size = 0x4, scoped, tag = 'scoped memory for tpu_custom_call.1']
    #allocation5 [shape = 'u8[131072]{0}', space=vmem, size = 0x20000, scoped, tag = 'input window, operand 1, single buffered']
    #allocation6 [shape = 's32[1]{0}', space=sflag, size = 0x4, scoped, tag = 'scoped memory for tpu_custom_call.1']
    #allocation7 [shape = 'u8[2048]{0}', space=vmem, size = 0x800, scoped, tag = 'input window, operand 2, single buffered']
    #allocation8 [shape = 'u8[4096]{0}', space=vmem, size = 0x1000, scoped, tag = 'output window, operand 0, single buffered']
    %8 = vsyncpa [#allocation3], 0
    %9 = vsyncpa [#allocation6], 0
    %10 = vsyncpa [#allocation4], 0
    // Predicated region
    $region2: #{tpu_custom_call.1} parent=1 // pred_check
      _
    $region3: #{tpu_custom_call.1} parent=1 // pred_check_branch
      %12 = sbr.rel (0) target = $region5
    $region4: #{tpu_custom_call.1} parent=1 // pred_region
      %s14 = ssub.s32 64, 64
      %15 = vsyncadd [#allocation3], %s14
      %s17 = sshll.u32 [#allocation2], 4
      %s18 = int_to_ptr.vmem [resolvable:$true] %s17
      %20 = dma.hbm_to_vmem [thread:$0]  %s0, 64, %s18, [#allocation3]
    $region5: #{tpu_custom_call.1} parent=1 // pred_fallthru
      _
    // Predicated region
    $region6: #{tpu_custom_call.1} parent=1 // pred_check
      _
    $region7: #{tpu_custom_call.1} parent=1 // pred_check_branch
      %22 = sbr.rel (0) target = $region9
    $region8: #{tpu_custom_call.1} parent=1 // pred_region
      %s24 = ssub.s32 4096, 4096
      %25 = vsyncadd [#allocation6], %s24
      %s26 = sshll.u32 [#allocation5], 4
      %s27 = int_to_ptr.vmem [resolvable:$true] %s26
      %32 = dma.hbm_to_vmem [thread:$0]  %s1, 4096, %s27, [#allocation6], 64, 64, 4
    $region9: #{tpu_custom_call.1} parent=1 // pred_fallthru
      _
    // Predicated region
    $region10: #{tpu_custom_call.1} parent=1 // pred_check
      _
    $region11: #{tpu_custom_call.1} parent=1 // pred_check_branch
      %34 = sbr.rel (0) target = $region13
    $region12: #{tpu_custom_call.1} parent=1 // pred_region
      %s36 = ssub.s32 64, 64
      %37 = vsyncadd [#allocation6], %s36
      %s38 = sshll.u32 [#allocation7], 4
      %s39 = int_to_ptr.vmem [resolvable:$true] %s38
      %44 = dma.hbm_to_vmem [thread:$0]  %s2, 64, %s39, [#allocation6], 16, 16, 1
    $region13: #{tpu_custom_call.1} parent=1 // pred_fallthru
      _
    // Predicated region
    $region14: #{tpu_custom_call.1} parent=1 // pred_check
      _
    $region15: #{tpu_custom_call.1} parent=1 // pred_check_branch
      %46 = sbr.rel (0) target = $region17
    $region16: #{tpu_custom_call.1} parent=1 // pred_region
      %47 = dma.done [#allocation3], 64
    $region17: #{tpu_custom_call.1} parent=1 // pred_fallthru
      _
    // Predicated region
    $region18: #{tpu_custom_call.1} parent=1 // pred_check
      _
    $region19: #{tpu_custom_call.1} parent=1 // pred_check_branch
      %49 = sbr.rel (0) target = $region21
    $region20: #{tpu_custom_call.1} parent=1 // pred_region
      %50 = dma.done [#allocation6], 4096
    $region21: #{tpu_custom_call.1} parent=1 // pred_fallthru
      _
    // Predicated region
    $region22: #{tpu_custom_call.1} parent=1 // pred_check
      _
    $region23: #{tpu_custom_call.1} parent=1 // pred_check_branch
      %52 = sbr.rel (0) target = $region25
    $region24: #{tpu_custom_call.1} parent=1 // pred_region
      %53 = dma.done [#allocation6], 64
    $region25: #{tpu_custom_call.1} parent=1 // pred_fallthru
      _
    %v55 = vld [vmem:[#allocation2] sm:$0xf]
    %v56 = vld [vmem:[#allocation5] sm:$0xf]
    %v57 = vld [vmem:[#allocation5 + $0x4] sm:$0xf]
    %v58 = vld [vmem:[#allocation5 + $0x8] sm:$0xf]
    %v59 = vld [vmem:[#allocation5 + $0xc] sm:$0xf]
    %v60 = vld [vmem:[#allocation5 + $0x10] sm:$0xf]
    %v61 = vld [vmem:[#allocation5 + $0x14] sm:$0xf]
    %v62 = vld [vmem:[#allocation5 + $0x18] sm:$0xf]
    %v63 = vld [vmem:[#allocation5 + $0x1c] sm:$0xf]
    %v64 = vld [vmem:[#allocation5 + $0x20] sm:$0xf]
    %v65 = vld [vmem:[#allocation5 + $0x24] sm:$0xf]
    %v66 = vld [vmem:[#allocation5 + $0x28] sm:$0xf]
    %v67 = vld [vmem:[#allocation5 + $0x2c] sm:$0xf]
    %v68 = vld [vmem:[#allocation5 + $0x30] sm:$0xf]
    %v69 = vld [vmem:[#allocation5 + $0x34] sm:$0xf]
    %v70 = vld [vmem:[#allocation5 + $0x38] sm:$0xf]
    %v71 = vld [vmem:[#allocation5 + $0x3c] sm:$0xf]
    %v72 = vld [vmem:[#allocation7] sm:$0x1]
    %v74 = vlaneseq
    %v75 = vshrl.u32 %v74, 7
    %v76 = vsub.s32 0, %v75
    %v77 = vrot.slane %v72, %v76
    %v95 = vunpack.c.l.b16 %v56
    %v96 = vunpack.c.l.b16 %v57
    %v97 = vunpack.c.l.b16 %v58
    %v98 = vunpack.c.l.b16 %v59
    %v99 = vunpack.c.l.b16 %v60
    %v100 = vunpack.c.l.b16 %v61
    %v101 = vunpack.c.l.b16 %v62
    %v102 = vunpack.c.l.b16 %v63
    %v103 = vunpack.c.l.b16 %v64
    %v104 = vunpack.c.l.b16 %v65
    %v105 = vunpack.c.l.b16 %v66
    %v106 = vunpack.c.l.b16 %v67
    %v107 = vunpack.c.l.b16 %v68
    %v108 = vunpack.c.l.b16 %v69
    %v109 = vunpack.c.l.b16 %v70
    %v110 = vunpack.c.l.b16 %v71
    %v111 = vpack.c.b16 %v96, %v95
    %v112 = vpack.c.b16 %v98, %v97
    %v113 = vpack.c.b16 %v100, %v99
    %v114 = vpack.c.b16 %v102, %v101
    %v115 = vpack.c.b16 %v104, %v103
    %v116 = vpack.c.b16 %v106, %v105
    %v117 = vpack.c.b16 %v108, %v107
    %v118 = vpack.c.b16 %v110, %v109
    %127 = vmatprep.subr.bf16.mxu0 0
    %128 = vmatpush1.bf16.msra.mxu0 %v118
    %129 = vmatprep.subr.bf16.mxu0 0
    %130 = vmatpush1.bf16.msra.mxu0 %v117
    %131 = vmatprep.subr.bf16.mxu0 0
    %132 = vmatpush1.bf16.msra.mxu0 %v116
    %133 = vmatprep.subr.bf16.mxu0 0
    %134 = vmatpush1.bf16.msra.mxu0 %v115
    %135 = vmatprep.subr.bf16.mxu0 0
    %136 = vmatpush1.bf16.msra.mxu0 %v114
    %137 = vmatprep.subr.bf16.mxu0 0
    %138 = vmatpush1.bf16.msra.mxu0 %v113
    %139 = vmatprep.subr.bf16.mxu0 0
    %140 = vmatpush1.bf16.msra.mxu0 %v112
    %141 = vmatprep.subr.bf16.mxu0 0
    %142 = vmatpush1.bf16.msra.mxu0 %v111
    %143 = vmatprep.subr.bf16.mxu0 0
    %144 = vmatpush2.bf16.msra.mxu0 0
    %145 = vmatprep.subr.bf16.mxu0 0
    %146 = vmatpush2.bf16.msra.mxu0 0
    %147 = vmatprep.subr.bf16.mxu0 0
    %148 = vmatpush2.bf16.msra.mxu0 0
    %149 = vmatprep.subr.bf16.mxu0 0
    %150 = vmatpush2.bf16.msra.mxu0 0
    %151 = vmatprep.subr.bf16.mxu0 0
    %152 = vmatpush2.bf16.msra.mxu0 0
    %153 = vmatprep.subr.bf16.mxu0 0
    %154 = vmatpush2.bf16.msra.mxu0 0
    %155 = vmatprep.subr.bf16.mxu0 0
    %156 = vmatpush2.bf16.msra.mxu0 0
    %157 = vmatprep.subr.bf16.mxu0 0
    %158 = vmatpush2.bf16.msra.mxu0 0
    %159 = vmatprep.mubr.bf16.mxu0 0
    %160 = vmatmul.mubr.bf16.gmra.mxu0 %v55
    %v161 = vpop.f32.mrf.mxu0
    %v162 = vadd.f32 %v77, %v161
    %v163 = vpop.f32.mrf.mxu0
    %v164 = vpop.f32.mrf.mxu0
    %v165 = vpop.f32.mrf.mxu0
    %166 = vdwg.mxu0
    %v167 = vmax.f32 %v162, 0.0
    %v168 = vpack.c.bf16 %v167, %v167
    %s169 = scalar_lea.vmem [#allocation5], 64
    %v170 = vld [vmem:[%s169] sm:$0xf]
    %v171 = vld [vmem:[%s169 + $0x4] sm:$0xf]
    %v172 = vld [vmem:[%s169 + $0x8] sm:$0xf]
    %v173 = vld [vmem:[%s169 + $0xc] sm:$0xf]
    %v174 = vld [vmem:[%s169 + $0x10] sm:$0xf]
    %v175 = vld [vmem:[%s169 + $0x14] sm:$0xf]
    %v176 = vld [vmem:[%s169 + $0x18] sm:$0xf]
    %v177 = vld [vmem:[%s169 + $0x1c] sm:$0xf]
    %v178 = vld [vmem:[%s169 + $0x20] sm:$0xf]
    %v179 = vld [vmem:[%s169 + $0x24] sm:$0xf]
    %v180 = vld [vmem:[%s169 + $0x28] sm:$0xf]
    %v181 = vld [vmem:[%s169 + $0x2c] sm:$0xf]
    %v182 = vld [vmem:[%s169 + $0x30] sm:$0xf]
    %v183 = vld [vmem:[%s169 + $0x34] sm:$0xf]
    %v184 = vld [vmem:[%s169 + $0x38] sm:$0xf]
    %v185 = vld [vmem:[%s169 + $0x3c] sm:$0xf]
    %s186 = scalar_lea.vmem [#allocation7], 1
    %v187 = vld [vmem:[%s186] sm:$0x1]
    %v189 = vlaneseq
    %v190 = vshrl.u32 %v189, 7
    %v191 = vsub.s32 0, %v190
    %v192 = vrot.slane %v187, %v191
    %v210 = vunpack.c.l.b16 %v170
    %v211 = vunpack.c.l.b16 %v171
    %v212 = vunpack.c.l.b16 %v172
    %v213 = vunpack.c.l.b16 %v173
    %v214 = vunpack.c.l.b16 %v174
    %v215 = vunpack.c.l.b16 %v175
    %v216 = vunpack.c.l.b16 %v176
    %v217 = vunpack.c.l.b16 %v177
    %v218 = vunpack.c.l.b16 %v178
    %v219 = vunpack.c.l.b16 %v179
    %v220 = vunpack.c.l.b16 %v180
    %v221 = vunpack.c.l.b16 %v181
    %v222 = vunpack.c.l.b16 %v182
    %v223 = vunpack.c.l.b16 %v183
    %v224 = vunpack.c.l.b16 %v184
    %v225 = vunpack.c.l.b16 %v185
    %v226 = vpack.c.b16 %v211, %v210
    %v227 = vpack.c.b16 %v213, %v212
    %v228 = vpack.c.b16 %v215, %v214
    %v229 = vpack.c.b16 %v217, %v216
    %v230 = vpack.c.b16 %v219, %v218
    %v231 = vpack.c.b16 %v221, %v220
    %v232 = vpack.c.b16 %v223, %v222
    %v233 = vpack.c.b16 %v225, %v224
    %242 = vmatprep.subr.bf16.mxu0 0
    %243 = vmatpush1.bf16.msra.mxu0 %v233
    %244 = vmatprep.subr.bf16.mxu0 0
    %245 = vmatpush1.bf16.msra.mxu0 %v232
    %246 = vmatprep.subr.bf16.mxu0 0
    %247 = vmatpush1.bf16.msra.mxu0 %v231
    %248 = vmatprep.subr.bf16.mxu0 0
    %249 = vmatpush1.bf16.msra.mxu0 %v230
    %250 = vmatprep.subr.bf16.mxu0 0
    %251 = vmatpush1.bf16.msra.mxu0 %v229
    %252 = vmatprep.subr.bf16.mxu0 0
    %253 = vmatpush1.bf16.msra.mxu0 %v228
    %254 = vmatprep.subr.bf16.mxu0 0
    %255 = vmatpush1.bf16.msra.mxu0 %v227
    %256 = vmatprep.subr.bf16.mxu0 0
    %257 = vmatpush1.bf16.msra.mxu0 %v226
    %258 = vmatprep.subr.bf16.mxu0 0
    %259 = vmatpush2.bf16.msra.mxu0 0
    %260 = vmatprep.subr.bf16.mxu0 0
    %261 = vmatpush2.bf16.msra.mxu0 0
    %262 = vmatprep.subr.bf16.mxu0 0
    %263 = vmatpush2.bf16.msra.mxu0 0
    %264 = vmatprep.subr.bf16.mxu0 0
    %265 = vmatpush2.bf16.msra.mxu0 0
    %266 = vmatprep.subr.bf16.mxu0 0
    %267 = vmatpush2.bf16.msra.mxu0 0
    %268 = vmatprep.subr.bf16.mxu0 0
    %269 = vmatpush2.bf16.msra.mxu0 0
    %270 = vmatprep.subr.bf16.mxu0 0
    %271 = vmatpush2.bf16.msra.mxu0 0
    %272 = vmatprep.subr.bf16.mxu0 0
    %273 = vmatpush2.bf16.msra.mxu0 0
    %274 = vmatprep.mubr.bf16.mxu0 0
    %275 = vmatmul.mubr.bf16.gmra.mxu0 %v168
    %v276 = vpop.f32.mrf.mxu0
    %v277 = vadd.f32 %v192, %v276
    %v278 = vpop.f32.mrf.mxu0
    %v279 = vpop.f32.mrf.mxu0
    %v280 = vpop.f32.mrf.mxu0
    %281 = vdwg.mxu0
    %v282 = vmax.f32 %v277, 0.0
    %v283 = vpack.c.bf16 %v282, %v282
    %s284 = scalar_lea.vmem [#allocation5], 128
    %v285 = vld [vmem:[%s284] sm:$0xf]
    %v286 = vld [vmem:[%s284 + $0x4] sm:$0xf]
    %v287 = vld [vmem:[%s284 + $0x8] sm:$0xf]
    %v288 = vld [vmem:[%s284 + $0xc] sm:$0xf]
    %v289 = vld [vmem:[%s284 + $0x10] sm:$0xf]
    %v290 = vld [vmem:[%s284 + $0x14] sm:$0xf]
    %v291 = vld [vmem:[%s284 + $0x18] sm:$0xf]
    %v292 = vld [vmem:[%s284 + $0x1c] sm:$0xf]
    %v293 = vld [vmem:[%s284 + $0x20] sm:$0xf]
    %v294 = vld [vmem:[%s284 + $0x24] sm:$0xf]
    %v295 = vld [vmem:[%s284 + $0x28] sm:$0xf]
    %v296 = vld [vmem:[%s284 + $0x2c] sm:$0xf]
    %v297 = vld [vmem:[%s284 + $0x30] sm:$0xf]
    %v298 = vld [vmem:[%s284 + $0x34] sm:$0xf]
    %v299 = vld [vmem:[%s284 + $0x38] sm:$0xf]
    %v300 = vld [vmem:[%s284 + $0x3c] sm:$0xf]
    %s301 = scalar_lea.vmem [#allocation7], 2
    %v302 = vld [vmem:[%s301] sm:$0x1]
    %v304 = vlaneseq
    %v305 = vshrl.u32 %v304, 7
    %v306 = vsub.s32 0, %v305
    %v307 = vrot.slane %v302, %v306
    %v325 = vunpack.c.l.b16 %v285
    %v326 = vunpack.c.l.b16 %v286
    %v327 = vunpack.c.l.b16 %v287
    %v328 = vunpack.c.l.b16 %v288
    %v329 = vunpack.c.l.b16 %v289
    %v330 = vunpack.c.l.b16 %v290
    %v331 = vunpack.c.l.b16 %v291
    %v332 = vunpack.c.l.b16 %v292
    %v333 = vunpack.c.l.b16 %v293
    %v334 = vunpack.c.l.b16 %v294
    %v335 = vunpack.c.l.b16 %v295
    %v336 = vunpack.c.l.b16 %v296
    %v337 = vunpack.c.l.b16 %v297
    %v338 = vunpack.c.l.b16 %v298
    %v339 = vunpack.c.l.b16 %v299
    %v340 = vunpack.c.l.b16 %v300
    %v341 = vpack.c.b16 %v326, %v325
    %v342 = vpack.c.b16 %v328, %v327
    %v343 = vpack.c.b16 %v330, %v329
    %v344 = vpack.c.b16 %v332, %v331
    %v345 = vpack.c.b16 %v334, %v333
    %v346 = vpack.c.b16 %v336, %v335
    %v347 = vpack.c.b16 %v338, %v337
    %v348 = vpack.c.b16 %v340, %v339
    %357 = vmatprep.subr.bf16.mxu0 0
    %358 = vmatpush1.bf16.msra.mxu0 %v348
    %359 = vmatprep.subr.bf16.mxu0 0
    %360 = vmatpush1.bf16.msra.mxu0 %v347
    %361 = vmatprep.subr.bf16.mxu0 0
    %362 = vmatpush1.bf16.msra.mxu0 %v346
    %363 = vmatprep.subr.bf16.mxu0 0
    %364 = vmatpush1.bf16.msra.mxu0 %v345
    %365 = vmatprep.subr.bf16.mxu0 0
    %366 = vmatpush1.bf16.msra.mxu0 %v344
    %367 = vmatprep.subr.bf16.mxu0 0
    %368 = vmatpush1.bf16.msra.mxu0 %v343
    %369 = vmatprep.subr.bf16.mxu0 0
    %370 = vmatpush1.bf16.msra.mxu0 %v342
    %371 = vmatprep.subr.bf16.mxu0 0
    %372 = vmatpush1.bf16.msra.mxu0 %v341
    %373 = vmatprep.subr.bf16.mxu0 0
    %374 = vmatpush2.bf16.msra.mxu0 0
    %375 = vmatprep.subr.bf16.mxu0 0
    %376 = vmatpush2.bf16.msra.mxu0 0
    %377 = vmatprep.subr.bf16.mxu0 0
    %378 = vmatpush2.bf16.msra.mxu0 0
    %379 = vmatprep.subr.bf16.mxu0 0
    %380 = vmatpush2.bf16.msra.mxu0 0
    %381 = vmatprep.subr.bf16.mxu0 0
    %382 = vmatpush2.bf16.msra.mxu0 0
    %383 = vmatprep.subr.bf16.mxu0 0
    %384 = vmatpush2.bf16.msra.mxu0 0
    %385 = vmatprep.subr.bf16.mxu0 0
    %386 = vmatpush2.bf16.msra.mxu0 0
    %387 = vmatprep.subr.bf16.mxu0 0
    %388 = vmatpush2.bf16.msra.mxu0 0
    %389 = vmatprep.mubr.bf16.mxu0 0
    %390 = vmatmul.mubr.bf16.gmra.mxu0 %v283
    %v391 = vpop.f32.mrf.mxu0
    %v392 = vadd.f32 %v307, %v391
    %v393 = vpop.f32.mrf.mxu0
    %v394 = vpop.f32.mrf.mxu0
    %v395 = vpop.f32.mrf.mxu0
    %396 = vdwg.mxu0
    %v397 = vmax.f32 %v392, 0.0
    %v398 = vpack.c.bf16 %v397, %v397
    %s399 = scalar_lea.vmem [#allocation5], 192
    %v400 = vld [vmem:[%s399] sm:$0xf]
    %v401 = vld [vmem:[%s399 + $0x4] sm:$0xf]
    %v402 = vld [vmem:[%s399 + $0x8] sm:$0xf]
    %v403 = vld [vmem:[%s399 + $0xc] sm:$0xf]
    %v404 = vld [vmem:[%s399 + $0x10] sm:$0xf]
    %v405 = vld [vmem:[%s399 + $0x14] sm:$0xf]
    %v406 = vld [vmem:[%s399 + $0x18] sm:$0xf]
    %v407 = vld [vmem:[%s399 + $0x1c] sm:$0xf]
    %v408 = vld [vmem:[%s399 + $0x20] sm:$0xf]
    %v409 = vld [vmem:[%s399 + $0x24] sm:$0xf]
    %v410 = vld [vmem:[%s399 + $0x28] sm:$0xf]
    %v411 = vld [vmem:[%s399 + $0x2c] sm:$0xf]
    %v412 = vld [vmem:[%s399 + $0x30] sm:$0xf]
    %v413 = vld [vmem:[%s399 + $0x34] sm:$0xf]
    %v414 = vld [vmem:[%s399 + $0x38] sm:$0xf]
    %v415 = vld [vmem:[%s399 + $0x3c] sm:$0xf]
    %s416 = scalar_lea.vmem [#allocation7], 3
    %v417 = vld [vmem:[%s416] sm:$0x1]
    %v419 = vlaneseq
    %v420 = vshrl.u32 %v419, 7
    %v421 = vsub.s32 0, %v420
    %v422 = vrot.slane %v417, %v421
    %v440 = vunpack.c.l.b16 %v400
    %v441 = vunpack.c.l.b16 %v401
    %v442 = vunpack.c.l.b16 %v402
    %v443 = vunpack.c.l.b16 %v403
    %v444 = vunpack.c.l.b16 %v404
    %v445 = vunpack.c.l.b16 %v405
    %v446 = vunpack.c.l.b16 %v406
    %v447 = vunpack.c.l.b16 %v407
    %v448 = vunpack.c.l.b16 %v408
    %v449 = vunpack.c.l.b16 %v409
    %v450 = vunpack.c.l.b16 %v410
    %v451 = vunpack.c.l.b16 %v411
    %v452 = vunpack.c.l.b16 %v412
    %v453 = vunpack.c.l.b16 %v413
    %v454 = vunpack.c.l.b16 %v414
    %v455 = vunpack.c.l.b16 %v415
    %v456 = vpack.c.b16 %v441, %v440
    %v457 = vpack.c.b16 %v443, %v442
    %v458 = vpack.c.b16 %v445, %v444
    %v459 = vpack.c.b16 %v447, %v446
    %v460 = vpack.c.b16 %v449, %v448
    %v461 = vpack.c.b16 %v451, %v450
    %v462 = vpack.c.b16 %v453, %v452
    %v463 = vpack.c.b16 %v455, %v454
    %472 = vmatprep.subr.bf16.mxu0 0
    %473 = vmatpush1.bf16.msra.mxu0 %v463
    %474 = vmatprep.subr.bf16.mxu0 0
    %475 = vmatpush1.bf16.msra.mxu0 %v462
    %476 = vmatprep.subr.bf16.mxu0 0
    %477 = vmatpush1.bf16.msra.mxu0 %v461
    %478 = vmatprep.subr.bf16.mxu0 0
    %479 = vmatpush1.bf16.msra.mxu0 %v460
    %480 = vmatprep.subr.bf16.mxu0 0
    %481 = vmatpush1.bf16.msra.mxu0 %v459
    %482 = vmatprep.subr.bf16.mxu0 0
    %483 = vmatpush1.bf16.msra.mxu0 %v458
    %484 = vmatprep.subr.bf16.mxu0 0
    %485 = vmatpush1.bf16.msra.mxu0 %v457
    %486 = vmatprep.subr.bf16.mxu0 0
    %487 = vmatpush1.bf16.msra.mxu0 %v456
    %488 = vmatprep.subr.bf16.mxu0 0
    %489 = vmatpush2.bf16.msra.mxu0 0
    %490 = vmatprep.subr.bf16.mxu0 0
    %491 = vmatpush2.bf16.msra.mxu0 0
    %492 = vmatprep.subr.bf16.mxu0 0
    %493 = vmatpush2.bf16.msra.mxu0 0
    %494 = vmatprep.subr.bf16.mxu0 0
    %495 = vmatpush2.bf16.msra.mxu0 0
    %496 = vmatprep.subr.bf16.mxu0 0
    %497 = vmatpush2.bf16.msra.mxu0 0
    %498 = vmatprep.subr.bf16.mxu0 0
    %499 = vmatpush2.bf16.msra.mxu0 0
    %500 = vmatprep.subr.bf16.mxu0 0
    %501 = vmatpush2.bf16.msra.mxu0 0
    %502 = vmatprep.subr.bf16.mxu0 0
    %503 = vmatpush2.bf16.msra.mxu0 0
    %504 = vmatprep.mubr.bf16.mxu0 0
    %505 = vmatmul.mubr.bf16.gmra.mxu0 %v398
    %v506 = vpop.f32.mrf.mxu0
    %v507 = vadd.f32 %v422, %v506
    %v508 = vpop.f32.mrf.mxu0
    %v509 = vpop.f32.mrf.mxu0
    %v510 = vpop.f32.mrf.mxu0
    %511 = vdwg.mxu0
    %512 = vst [vmem:[#allocation8] sm:$0xff] %v507
    // Predicated region
    $region26: #{tpu_custom_call.1} parent=1 // pred_check
      _
    $region27: #{tpu_custom_call.1} parent=1 // pred_check_branch
      %514 = sbr.rel (0) target = $region29
    $region28: #{tpu_custom_call.1} parent=1 // pred_region
      %s516 = ssub.s32 128, 128
      %517 = vsyncadd [#allocation4], %s516
      %s519 = sshll.u32 [#allocation8], 4
      %s520 = int_to_ptr.vmem [resolvable:$true] %s519
      %522 = dma.vmem_to_hbm [thread:$0]  %s520, 128, %s3, [#allocation4]
    $region29: #{tpu_custom_call.1} parent=1 // pred_fallthru
      _
    // Predicated region
    $region30: #{tpu_custom_call.1} parent=1 // pred_check
      _
    $region31: #{tpu_custom_call.1} parent=1 // pred_check_branch
      %524 = sbr.rel (0) target = $region33
    $region32: #{tpu_custom_call.1} parent=1 // pred_region
      %525 = dma.done [#allocation4], 128
    $region33: #{tpu_custom_call.1} parent=1 // pred_fallthru
      _
    %526 = vsyncpa [#allocation3], 1
    %527 = vsyncpa [#allocation6], 1
    %528 = vsyncpa [#allocation4], 1

</llo_original>
